<compile_context>
chip_gen: v6e
topology: v6e:2x2x1
jax: 0.10.0
libtpu: 0.0.40
codegen_flags: <defaults>
</compile_context>

<pallas_src>
import jax
import jax.numpy as jnp
from jax import lax
from jax.experimental import pallas as pl
from jax.experimental.pallas import tpu as pltpu


_LANE = 128


def _round_up(x, m):
    return ((x + m - 1) // m) * m


def _cdiv(a, b):
    return -(-a // b)


def _vmem_capacity_bytes():
    """Physical VMEM per core, with a conservative fallback."""
    try:
        info = pltpu.get_tpu_info()
        cap = getattr(info, "vmem_capacity_bytes", None)
        if cap:
            return int(cap)
    except Exception:
        pass
    return 64 * 1024 * 1024  # v7x-per-TC sized fallback (safe everywhere)


def _default_num_splits():
    """v7x has 2 TensorCores per chip: split the D-reduction across them."""
    try:
        kind = jax.devices()[0].device_kind.lower()
        if "v7" in kind:
            return 2
    except Exception:
        pass
    return 1


def _plan_tiles(d, bsz, itemsize, num_splits, max_chunk):
    """Pick (TK, n_k, D_pad, vmem_limit) — generation-aware VMEM budgeting."""
    d128 = _round_up(max(d, 1), _LANE)
    cap = _vmem_capacity_bytes()
    # ~80 MiB target on 128 MiB chips (v5e/v6e), ~44 MiB on 64 MiB v7x.
    total_target = 80 * 1024 * 1024 if cap >= 96 * 1024 * 1024 else 44 * 1024 * 1024
    # Reserve for resident f32 output accumulators (x2 buffering) + slack.
    out_bytes = 2 * (bsz * bsz + 2 * bsz) * 4
    slack = 2 * 1024 * 1024
    input_budget = max(0, total_target - out_bytes - slack)
    # 2 inputs x 2 pipeline buffers x (B, TK) x itemsize <= input_budget.
    tk_cap = (input_budget // (4 * bsz * itemsize)) // _LANE * _LANE
    tk_cap = max(_LANE, tk_cap)
    if max_chunk is not None:
        tk_cap = min(tk_cap, max(_LANE, (max_chunk // _LANE) * _LANE))
    # Keep each parallel split's share at least one chunk (avoid over-padding).
    per_split = _round_up(_cdiv(d128, num_splits), _LANE)
    tk = min(tk_cap, per_split)
    d_pad = _round_up(d128, tk * num_splits)
    n_k = d_pad // (tk * num_splits)

    need = 4 * bsz * tk * itemsize + out_bytes + slack
    vmem_limit = int(min(max(need + 4 * 1024 * 1024, 32 * 1024 * 1024),
                         max(cap - 4 * 1024 * 1024, 32 * 1024 * 1024)))
    return tk, n_k, d_pad, vmem_limit


def _fdl_kernel(c_ref, s_ref, g_ref, cn2_ref, sn2_ref):
    k = pl.program_id(1)

    @pl.when(k == 0)
    def _init():
        g_ref[...] = jnp.zeros_like(g_ref)
        cn2_ref[...] = jnp.zeros_like(cn2_ref)
        sn2_ref[...] = jnp.zeros_like(sn2_ref)

    c = c_ref[...]   # (B, TK) native dtype (bf16 or f32)
    s = s_ref[...]   # (B, TK)

    # Unnormalized Gram chunk on the MXU: contract dim 1 of both operands —
    # native-dtype inputs, f32 accumulation, no transpose, no (D, B) tile.
    g_ref[0] += lax.dot_general(
        c, s,
        dimension_numbers=(((1,), (1,)), ((), ())),
        preferred_element_type=jnp.float32)

    # Per-row squared-norm partial sums, accumulated in f32.
    c32 = c.astype(jnp.float32)
    s32 = s.astype(jnp.float32)
    cn2_ref[0] += jnp.sum(c32 * c32, axis=1, keepdims=True)
    sn2_ref[0] += jnp.sum(s32 * s32, axis=1, keepdims=True)


def feature_distribution_loss(client_features, server_features, *,
                              reduction="mean", max_chunk=None,
                              num_splits=None, stream_dtype=None):
    """client_features: (B, C, H, W); server_features: (B, D), D == C*H*W.

    stream_dtype: optionally cast inputs (e.g. jnp.bfloat16) before streaming
    to halve HBM traffic; accumulation stays f32 inside the kernel.
    """
    bsz = client_features.shape[0]
    c_flat = client_features.reshape(bsz, -1)   # glue: flatten like torch .view
    assert c_flat.shape == server_features.shape, "mm requires matching feature dims"
    d = c_flat.shape[1]

    server = server_features
    if stream_dtype is not None:
        c_flat = c_flat.astype(stream_dtype)
        server = server.astype(stream_dtype)

    if num_splits is None:
        num_splits = _default_num_splits()
    num_splits = max(1, int(num_splits))

    itemsize = jnp.dtype(c_flat.dtype).itemsize
    tk, n_k, d_pad, vmem_limit = _plan_tiles(d, bsz, itemsize, num_splits, max_chunk)

    # Zero-pad D: exact for both the Gram matrix and the squared norms.
    if d_pad != d:
        pad = ((0, 0), (0, d_pad - d))
        c_flat = jnp.pad(c_flat, pad)
        server = jnp.pad(server, pad)

    cost = pl.CostEstimate(
        flops=2 * bsz * bsz * d_pad + 4 * bsz * d_pad,
        transcendentals=0,
        bytes_accessed=2 * bsz * d_pad * itemsize
        + num_splits * (bsz * bsz + 2 * bsz) * 4,
    )

    g_parts, cn2_parts, sn2_parts = pl.pallas_call(
        _fdl_kernel,
        out_shape=(
            jax.ShapeDtypeStruct((num_splits, bsz, bsz), jnp.float32),
            jax.ShapeDtypeStruct((num_splits, bsz, 1), jnp.float32),
            jax.ShapeDtypeStruct((num_splits, bsz, 1), jnp.float32),
        ),
        grid_spec=pltpu.PrefetchScalarGridSpec(
            num_scalar_prefetch=0,
            grid=(num_splits, n_k),
            in_specs=[
                pl.BlockSpec((bsz, tk), lambda p, k: (0, p * n_k + k)),
                pl.BlockSpec((bsz, tk), lambda p, k: (0, p * n_k + k)),
            ],
            out_specs=(
                pl.BlockSpec((1, bsz, bsz), lambda p, k: (p, 0, 0)),
                pl.BlockSpec((1, bsz, 1), lambda p, k: (p, 0, 0)),
                pl.BlockSpec((1, bsz, 1), lambda p, k: (p, 0, 0)),
            ),
        ),
        compiler_params=pltpu.CompilerParams(
            dimension_semantics=("parallel", "arbitrary"),
            vmem_limit_bytes=vmem_limit,
        ),
        cost_estimate=cost,
    )(c_flat, server)

    # Tiny O(B^2) finish in plain JAX: normalize scaling + identity MSE.
    g = jnp.sum(g_parts, axis=0)           # (B, B)
    cn2 = jnp.sum(cn2_parts, axis=0)        # (B, 1)
    sn2 = jnp.sum(sn2_parts, axis=0)        # (B, 1)
    eps = jnp.float32(1e-12)                # F.normalize default eps
    c_inv = 1.0 / jnp.maximum(jnp.sqrt(cn2), eps)
    s_inv = 1.0 / jnp.maximum(jnp.sqrt(sn2), eps)
    sim = g * c_inv * s_inv.T
    target = jnp.eye(bsz, dtype=jnp.float32)
    sq = (sim - target) ** 2
    if reduction == "mean":
        return jnp.mean(sq)
    if reduction == "sum":
        return jnp.sum(sq)
    return sq                               # reduction == 'none'


def _reference(client_features, server_features):
    bsz = client_features.shape[0]
    c = client_features.reshape(bsz, -1).astype(jnp.float32)
    s = server_features.astype(jnp.float32)
    c = c / jnp.maximum(jnp.linalg.norm(c, axis=1, keepdims=True), 1e-12)
    s = s / jnp.maximum(jnp.linalg.norm(s, axis=1, keepdims=True), 1e-12)
    sim = c @ s.T
    tgt = jnp.eye(bsz, dtype=jnp.float32)
    return jnp.mean((sim - tgt) ** 2)


if __name__ == "__main__":
    key = jax.random.PRNGKey(0)
    k1, k2, k3, k4 = jax.random.split(key, 4)

    # --- Test 1: 128-aligned D, multi-step K reduction, single split ---
    B, C, H, W = 8, 4, 16, 16              # D = C*H*W = 1024
    D = C * H * W
    client = jax.random.normal(k1, (B, C, H, W), dtype=jnp.float32)
    server = jax.random.normal(k2, (B, D), dtype=jnp.float32)

    loss = feature_distribution_loss(client, server, max_chunk=256, num_splits=1)
    loss = jax.block_until_ready(loss)
    ref = _reference(client, server)
    assert jnp.allclose(loss, ref, atol=1e-5, rtol=1e-5), (loss, ref)

    # --- Test 2: 2-way parallel split of the reduction (v7x two-TC path) ---
    loss2 = jax.block_until_ready(
        feature_distribution_loss(client, server, max_chunk=256, num_splits=2))
    assert jnp.allclose(loss2, ref, atol=1e-5, rtol=1e-5), (loss2, ref)

    # --- Test 3: bf16 streaming (halves HBM bytes), looser tolerance ---
    loss3 = jax.block_until_ready(
        feature_distribution_loss(client, server, max_chunk=256,
                                  stream_dtype=jnp.bfloat16))
    assert jnp.allclose(loss3, ref, atol=1e-3, rtol=5e-2), (loss3, ref)

    # --- Test 4: D not a multiple of 128 -> zero-padded in the wrapper ---
    B2, C2, H2, W2 = 8, 3, 10, 10          # D = 300 -> padded
    D2 = C2 * H2 * W2
    client2 = jax.random.normal(k3, (B2, C2, H2, W2), dtype=jnp.float32)
    server2 = jax.random.normal(k4, (B2, D2), dtype=jnp.float32)
    loss4 = jax.block_until_ready(
        feature_distribution_loss(client2, server2, num_splits=2))
    ref4 = _reference(client2, server2)
    assert jnp.allclose(loss4, ref4, atol=1e-5, rtol=1e-5), (loss4, ref4)

    print("KERNEL_OK")
</pallas_src>

<mosaic_0001>
module attributes {stable_mosaic.version = 11 : i64} {
  func.func @_fdl_kernel(%arg0: i32, %arg1: i32, %arg2: memref<8x256xf32, #tpu.memory_space<vmem>>, %arg3: memref<8x256xf32, #tpu.memory_space<vmem>>, %arg4: memref<1x8x8xf32, #tpu.memory_space<vmem>>, %arg5: memref<1x8x1xf32, #tpu.memory_space<vmem>>, %arg6: memref<1x8x1xf32, #tpu.memory_space<vmem>>) attributes {dimension_semantics = [#tpu.dimension_semantics<parallel>, #tpu.dimension_semantics<arbitrary>], iteration_bounds = array<i64: 1, 4>, scalar_prefetch = 0 : i64, scratch_operands = 0 : i64, tpu.core_type = #tpu.core_type<tc>, window_params = [{transform_indices = @transform_0, window_bounds = array<i64: 8, 256>}, {transform_indices = @transform_1, window_bounds = array<i64: 8, 256>}, {transform_indices = @transform_2, window_bounds = array<i64: 1, 8, 8>}, {transform_indices = @transform_3, window_bounds = array<i64: 1, 8, 1>}, {transform_indices = @transform_4, window_bounds = array<i64: 1, 8, 1>}]} {
    %c0_i32 = arith.constant 0 : i32
    %0 = arith.cmpi eq, %arg1, %c0_i32 : i32
    %1 = arith.extui %0 : i1 to i32
    %c0_i32_0 = arith.constant 0 : i32
    %2 = arith.cmpi ne, %1, %c0_i32_0 : i32
    scf.if %2 {
      %cst_24 = arith.constant 0.000000e+00 : f32
      %30 = vector.broadcast %cst_24 : f32 to vector<1x8x8xf32>
      %c0_25 = arith.constant 0 : index
      %c0_26 = arith.constant 0 : index
      %c0_27 = arith.constant 0 : index
      %31 = vector.load %arg4[%c0_25, %c0_26, %c0_27] : memref<1x8x8xf32, #tpu.memory_space<vmem>>, vector<1x8x8xf32>
      tpu.vector_store %arg4[%c0_25, %c0_26, %c0_27], %30 {strides = array<i32>} : memref<1x8x8xf32, #tpu.memory_space<vmem>>, vector<1x8x8xf32>,
      %cst_28 = arith.constant 0.000000e+00 : f32
      %32 = vector.broadcast %cst_28 : f32 to vector<1x8x1xf32>
      %c0_29 = arith.constant 0 : index
      %c0_30 = arith.constant 0 : index
      %c0_31 = arith.constant 0 : index
      %33 = vector.load %arg5[%c0_29, %c0_30, %c0_31] : memref<1x8x1xf32, #tpu.memory_space<vmem>>, vector<1x8x1xf32>
      tpu.vector_store %arg5[%c0_29, %c0_30, %c0_31], %32 {strides = array<i32>} : memref<1x8x1xf32, #tpu.memory_space<vmem>>, vector<1x8x1xf32>,
      %cst_32 = arith.constant 0.000000e+00 : f32
      %34 = vector.broadcast %cst_32 : f32 to vector<1x8x1xf32>
      %c0_33 = arith.constant 0 : index
      %c0_34 = arith.constant 0 : index
      %c0_35 = arith.constant 0 : index
      %35 = vector.load %arg6[%c0_33, %c0_34, %c0_35] : memref<1x8x1xf32, #tpu.memory_space<vmem>>, vector<1x8x1xf32>
      tpu.vector_store %arg6[%c0_33, %c0_34, %c0_35], %34 {strides = array<i32>} : memref<1x8x1xf32, #tpu.memory_space<vmem>>, vector<1x8x1xf32>,
    } else {
    }
    %c0 = arith.constant 0 : index
    %c0_1 = arith.constant 0 : index
    %3 = vector.load %arg2[%c0, %c0_1] : memref<8x256xf32, #tpu.memory_space<vmem>>, vector<8x256xf32>
    %c0_2 = arith.constant 0 : index
    %c0_3 = arith.constant 0 : index
    %4 = vector.load %arg3[%c0_2, %c0_3] : memref<8x256xf32, #tpu.memory_space<vmem>>, vector<8x256xf32>
    %c0_4 = arith.constant 0 : index
    %c0_5 = arith.constant 0 : index
    %c0_6 = arith.constant 0 : index
    %5 = vector.load %arg4[%c0_4, %c0_5, %c0_6] : memref<1x8x8xf32, #tpu.memory_space<vmem>>, vector<1x8x8xf32>
    %6 = vector.shape_cast %5 : vector<1x8x8xf32> to vector<8x8xf32>
    %cst = arith.constant dense<0.000000e+00> : vector<8x8xf32>
    %7 = tpu.matmul %3, %4, %cst {dimension_numbers = #tpu.dot_dimension_numbers<[1], [1], [0], [0], [0, 0, 1, 0], [], []>} : vector<8x256xf32>, vector<8x256xf32>, vector<8x8xf32> -> vector<8x8xf32>
    %8 = arith.addf %6, %7 : vector<8x8xf32>
    %c0_7 = arith.constant 0 : index
    %c0_8 = arith.constant 0 : index
    %c0_9 = arith.constant 0 : index
    %9 = vector.load %arg4[%c0_7, %c0_8, %c0_9] : memref<1x8x8xf32, #tpu.memory_space<vmem>>, vector<1x8x8xf32>
    %10 = vector.shape_cast %9 : vector<1x8x8xf32> to vector<8x8xf32>
    %11 = vector.shape_cast %8 : vector<8x8xf32> to vector<1x8x8xf32>
    tpu.vector_store %arg4[%c0_7, %c0_8, %c0_9], %11 {strides = array<i32>} : memref<1x8x8xf32, #tpu.memory_space<vmem>>, vector<1x8x8xf32>,
    %c0_10 = arith.constant 0 : index
    %c0_11 = arith.constant 0 : index
    %c0_12 = arith.constant 0 : index
    %12 = vector.load %arg5[%c0_10, %c0_11, %c0_12] : memref<1x8x1xf32, #tpu.memory_space<vmem>>, vector<1x8x1xf32>
    %13 = vector.shape_cast %12 : vector<1x8x1xf32> to vector<8x1xf32>
    %14 = arith.mulf %3, %3 : vector<8x256xf32>
    %cst_13 = arith.constant dense<0.000000e+00> : vector<8xf32>
    %15 = vector.multi_reduction <add>, %14, %cst_13 [1] : vector<8x256xf32> to vector<8xf32>
    %16 = vector.shape_cast %15 : vector<8xf32> to vector<8x1xf32>
    %17 = arith.addf %13, %16 : vector<8x1xf32>
    %c0_14 = arith.constant 0 : index
    %c0_15 = arith.constant 0 : index
    %c0_16 = arith.constant 0 : index
    %18 = vector.load %arg5[%c0_14, %c0_15, %c0_16] : memref<1x8x1xf32, #tpu.memory_space<vmem>>, vector<1x8x1xf32>
    %19 = vector.shape_cast %18 : vector<1x8x1xf32> to vector<8x1xf32>
    %20 = vector.shape_cast %17 : vector<8x1xf32> to vector<1x8x1xf32>
    tpu.vector_store %arg5[%c0_14, %c0_15, %c0_16], %20 {strides = array<i32>} : memref<1x8x1xf32, #tpu.memory_space<vmem>>, vector<1x8x1xf32>,
    %c0_17 = arith.constant 0 : index
    %c0_18 = arith.constant 0 : index
    %c0_19 = arith.constant 0 : index
    %21 = vector.load %arg6[%c0_17, %c0_18, %c0_19] : memref<1x8x1xf32, #tpu.memory_space<vmem>>, vector<1x8x1xf32>
    %22 = vector.shape_cast %21 : vector<1x8x1xf32> to vector<8x1xf32>
    %23 = arith.mulf %4, %4 : vector<8x256xf32>
    %cst_20 = arith.constant dense<0.000000e+00> : vector<8xf32>
    %24 = vector.multi_reduction <add>, %23, %cst_20 [1] : vector<8x256xf32> to vector<8xf32>
    %25 = vector.shape_cast %24 : vector<8xf32> to vector<8x1xf32>
    %26 = arith.addf %22, %25 : vector<8x1xf32>
    %c0_21 = arith.constant 0 : index
    %c0_22 = arith.constant 0 : index
    %c0_23 = arith.constant 0 : index
    %27 = vector.load %arg6[%c0_21, %c0_22, %c0_23] : memref<1x8x1xf32, #tpu.memory_space<vmem>>, vector<1x8x1xf32>
    %28 = vector.shape_cast %27 : vector<1x8x1xf32> to vector<8x1xf32>
    %29 = vector.shape_cast %26 : vector<8x1xf32> to vector<1x8x1xf32>
    tpu.vector_store %arg6[%c0_21, %c0_22, %c0_23], %29 {strides = array<i32>} : memref<1x8x1xf32, #tpu.memory_space<vmem>>, vector<1x8x1xf32>,
    return
  }
  func.func @transform_0(%arg0: i32, %arg1: i32) -> (i32, i32) {
    %c4_i32 = arith.constant 4 : i32
    %0 = arith.muli %arg0, %c4_i32 : i32
    %1 = arith.addi %0, %arg1 : i32
    %c0_i32 = arith.constant 0 : i32
    %c0_i32_0 = arith.constant 0 : i32
    return %c0_i32, %1 : i32, i32
  }
  func.func @transform_1(%arg0: i32, %arg1: i32) -> (i32, i32) {
    %c4_i32 = arith.constant 4 : i32
    %0 = arith.muli %arg0, %c4_i32 : i32
    %1 = arith.addi %0, %arg1 : i32
    %c0_i32 = arith.constant 0 : i32
    %c0_i32_0 = arith.constant 0 : i32
    return %c0_i32, %1 : i32, i32
  }
  func.func @transform_2(%arg0: i32, %arg1: i32) -> (i32, i32, i32) {
    %c0_i32 = arith.constant 0 : i32
    %c0_i32_0 = arith.constant 0 : i32
    %c0_i32_1 = arith.constant 0 : i32
    return %arg0, %c0_i32, %c0_i32_0 : i32, i32, i32
  }
  func.func @transform_3(%arg0: i32, %arg1: i32) -> (i32, i32, i32) {
    %c0_i32 = arith.constant 0 : i32
    %c0_i32_0 = arith.constant 0 : i32
    %c0_i32_1 = arith.constant 0 : i32
    return %arg0, %c0_i32, %c0_i32_0 : i32, i32, i32
  }
  func.func @transform_4(%arg0: i32, %arg1: i32) -> (i32, i32, i32) {
    %c0_i32 = arith.constant 0 : i32
    %c0_i32_0 = arith.constant 0 : i32
    %c0_i32_1 = arith.constant 0 : i32
    return %arg0, %c0_i32, %c0_i32_0 : i32, i32, i32
  }
}

</mosaic_0001>

<llo_original>
// kernel: tpu_custom_call.1
$region0: #{tpu_custom_call.1}
  #allocation0 [shape = 'u32[]', space=smem, size = 0x4, offset = 0x4, fixed_abs, tag = 'smem constant byte address 0x4 - core index']
  #allocation1 [shape = 'u32[144,128]{1,0:T(1,128)}', space=vmem, size = 0x12000, scoped, tag = 'internal scratch']
  %s0 = inlined_call_operand.hbm [shape: f32[8,1024], index: 0, kind: input, shape index: {}]
  %s1 = inlined_call_operand.hbm [shape: f32[8,1024], index: 1, kind: input, shape index: {}]
  %s2 = inlined_call_operand.hbm [shape: f32[1,8,8], index: 2, kind: output, shape index: {0}]
  %s3 = inlined_call_operand.vmem [shape: f32[1,8,1], index: 3, kind: output, shape index: {1}]
  %s4 = inlined_call_operand.vmem [shape: f32[1,8,1], index: 4, kind: output, shape index: {2}]
  %5 = xla_tuple %s2, %s3, %s4
  %s6 = sld [smem:[#allocation0]]
  $region69: #{tpu_custom_call.1} parent=0
    _
  %s8 = ssub.s32 1, %s6
  %s9 = scalar_select 0, %s8, %s6
  $region1: #{tpu_custom_call.1} parent=0
    #allocation2 [shape = 'u8[16384]{0}', space=vmem, size = 0x4000, scoped, tag = 'input window, operand 0']
    #allocation3 [shape = 's32[2]{0}', space=sflag, size = 0x8, scoped, tag = 'scoped memory for tpu_custom_call.1']
    #allocation4 [shape = 's32[2]{0}', space=sflag, size = 0x8, scoped, tag = 'scoped memory for tpu_custom_call.1']
    #allocation5 [shape = 'u8[16384]{0}', space=vmem, size = 0x4000, scoped, tag = 'input window, operand 1']
    #allocation6 [shape = 's32[2]{0}', space=sflag, size = 0x8, scoped, tag = 'scoped memory for tpu_custom_call.1']
    #allocation7 [shape = 'u8[4096]{0}', space=vmem, size = 0x1000, scoped, tag = 'output window, operand 0, single buffered']
    %10 = vsyncpa [#allocation3], 0
    %s11 = scalar_lea.sflag [#allocation3], 1
    %12 = vsyncpa %s11, 0
    %13 = vsyncpa [#allocation6], 0
    %s14 = scalar_lea.sflag [#allocation6], 1
    %15 = vsyncpa %s14, 0
    %16 = vsyncpa [#allocation4], 0
    loop: start=0, step=1, limit=6
    $region2: #{tpu_custom_call.1} parent=1 // loop_pre_header
      _
    $region3: #{tpu_custom_call.1} parent=1 // loop_header
      %s18 = sphi 0, %s22
      %p19 = scmp.ge.s32.totalorder %s18, 6
      %s25 = sphi 0, %s37
      %s26 = sphi 0, %s33
      %s27 = sphi 0, %s25
      %s28 = sphi 0, %s26
      %s29 = sphi 0, %s27
      %s30 = sphi 0, %s28
      %s44 = sphi 0, %s46
      %s47 = sphi 0, %s44
      %s48 = sphi 0, %s47
      %s64 = sphi 0, %s48
      %s74 = sphi 0, %s76
      %s77 = sphi 0, %s74
      %s78 = sphi 0, %s77
      %s94 = sphi 0, %s78
      %s100 = sphi 0, %s102
      %s103 = sphi 0, %s100
      %s104 = sphi 0, %s103
      %s120 = sphi 0, %s104
      %s126 = sphi 0, %s128
      %s129 = sphi 0, %s126
      %s130 = sphi 0, %s129
      %s146 = sphi 0, %s130
      %s152 = sphi 0, %s154
      %s155 = sphi 0, %s152
      %s156 = sphi 0, %s155
      %s172 = sphi 0, %s156
    $region4: #{tpu_custom_call.1} parent=1 // loop_header_branch
      %21 = sbr.rel (%p19) target = $region8
    $region5: #{tpu_custom_call.1} parent=1 // loop_body
      %s23 = ssub.s32 %s18, 1
      %s24 = ssub.s32 %s18, 2
      %s31 = sadd.s32 1, %s26
      %p32 = scmp.ge.s32.totalorder %s31, 4
      %s33 = scalar_select %p32, 0, %s31
      %s34 = sadd.s32 1, %s25
      %s35 = scalar_select %p32, %s34, %s25
      %p36 = scmp.ge.s32.totalorder %s35, 1
      %s37 = scalar_select %p36, 0, %s35
      %s38 = smul.u32 %s25, 4
      %s39 = sadd.s32 %s38, %s26
      %s40 = smul.u32 %s37, 4
      %s41 = sadd.s32 %s40, %s33
      %s42 = ssub.s32 %s39, %s41
      %p43 = scmp.eq.s32.totalorder %s42, 0
      %s45 = sadd.s32 %s44, 1
      %s46 = scalar_select %p43, %s44, %s45
      %p49 = pneg %p43
      %p50 = scmp.eq.s32.totalorder %s18, 3
      %p51 = por %p49, %p50
      %p52 = scmp.ne.s32.totalorder %s44, %s47
      %p53 = scmp.eq.s32.totalorder %s18, 0
      %p54 = por %p52, %p53
      %p55 = scmp.ne.s32.totalorder %s44, %s47
      %p56 = scmp.eq.s32.totalorder %s23, 3
      %p57 = por %p55, %p56
      %p58 = scmp.ne.s32.totalorder %s47, %s48
      %p59 = scmp.eq.s32.totalorder %s23, 0
      %p60 = por %p58, %p59
      %p61 = scmp.ne.s32.totalorder %s47, %s48
      %p62 = scmp.eq.s32.totalorder %s24, 3
      %p63 = por %p61, %p62
      %p65 = scmp.ne.s32.totalorder %s48, %s64
      %p66 = scmp.eq.s32.totalorder %s24, 0
      %p67 = por %p65, %p66
      %s68 = smul.u32 %s25, 4
      %s69 = sadd.s32 %s68, %s26
      %s70 = smul.u32 %s37, 4
      %s71 = sadd.s32 %s70, %s33
      %s72 = ssub.s32 %s69, %s71
      %p73 = scmp.eq.s32.totalorder %s72, 0
      %s75 = sadd.s32 %s74, 1
      %s76 = scalar_select %p73, %s74, %s75
      %p79 = pneg %p73
      %p80 = scmp.eq.s32.totalorder %s18, 3
      %p81 = por %p79, %p80
      %p82 = scmp.ne.s32.totalorder %s74, %s77
      %p83 = scmp.eq.s32.totalorder %s18, 0
      %p84 = por %p82, %p83
      %p85 = scmp.ne.s32.totalorder %s74, %s77
      %p86 = scmp.eq.s32.totalorder %s23, 3
      %p87 = por %p85, %p86
      %p88 = scmp.ne.s32.totalorder %s77, %s78
      %p89 = scmp.eq.s32.totalorder %s23, 0
      %p90 = por %p88, %p89
      %p91 = scmp.ne.s32.totalorder %s77, %s78
      %p92 = scmp.eq.s32.totalorder %s24, 3
      %p93 = por %p91, %p92
      %p95 = scmp.ne.s32.totalorder %s78, %s94
      %p96 = scmp.eq.s32.totalorder %s24, 0
      %p97 = por %p95, %p96
      %s98 = ssub.s32 %s25, %s37
      %p99 = scmp.eq.s32.totalorder %s98, 0
      %s101 = sadd.s32 %s100, 1
      %s102 = scalar_select %p99, %s100, %s101
      %p105 = pneg %p99
      %p106 = scmp.eq.s32.totalorder %s18, 3
      %p107 = por %p105, %p106
      %p108 = scmp.ne.s32.totalorder %s100, %s103
      %p109 = scmp.eq.s32.totalorder %s18, 0
      %p110 = por %p108, %p109
      %p111 = scmp.ne.s32.totalorder %s100, %s103
      %p112 = scmp.eq.s32.totalorder %s23, 3
      %p113 = por %p111, %p112
      %p114 = scmp.ne.s32.totalorder %s103, %s104
      %p115 = scmp.eq.s32.totalorder %s23, 0
      %p116 = por %p114, %p115
      %p117 = scmp.ne.s32.totalorder %s103, %s104
      %p118 = scmp.eq.s32.totalorder %s24, 3
      %p119 = por %p117, %p118
      %p121 = scmp.ne.s32.totalorder %s104, %s120
      %p122 = scmp.eq.s32.totalorder %s24, 0
      %p123 = por %p121, %p122
      %s124 = ssub.s32 %s25, %s37
      %p125 = scmp.eq.s32.totalorder %s124, 0
      %s127 = sadd.s32 %s126, 1
      %s128 = scalar_select %p125, %s126, %s127
      %p131 = pneg %p125
      %p132 = scmp.eq.s32.totalorder %s18, 3
      %p133 = por %p131, %p132
      %p134 = scmp.ne.s32.totalorder %s126, %s129
      %p135 = scmp.eq.s32.totalorder %s18, 0
      %p136 = por %p134, %p135
      %p137 = scmp.ne.s32.totalorder %s126, %s129
      %p138 = scmp.eq.s32.totalorder %s23, 3
      %p139 = por %p137, %p138
      %p140 = scmp.ne.s32.totalorder %s129, %s130
      %p141 = scmp.eq.s32.totalorder %s23, 0
      %p142 = por %p140, %p141
      %p143 = scmp.ne.s32.totalorder %s129, %s130
      %p144 = scmp.eq.s32.totalorder %s24, 3
      %p145 = por %p143, %p144
      %p147 = scmp.ne.s32.totalorder %s130, %s146
      %p148 = scmp.eq.s32.totalorder %s24, 0
      %p149 = por %p147, %p148
      %s150 = ssub.s32 %s25, %s37
      %p151 = scmp.eq.s32.totalorder %s150, 0
      %s153 = sadd.s32 %s152, 1
      %s154 = scalar_select %p151, %s152, %s153
      %p157 = pneg %p151
      %p158 = scmp.eq.s32.totalorder %s18, 3
      %p159 = por %p157, %p158
      %p160 = scmp.ne.s32.totalorder %s152, %s155
      %p161 = scmp.eq.s32.totalorder %s18, 0
      %p162 = por %p160, %p161
      %p163 = scmp.ne.s32.totalorder %s152, %s155
      %p164 = scmp.eq.s32.totalorder %s23, 3
      %p165 = por %p163, %p164
      %p166 = scmp.ne.s32.totalorder %s155, %s156
      %p167 = scmp.eq.s32.totalorder %s23, 0
      %p168 = por %p166, %p167
      %p169 = scmp.ne.s32.totalorder %s155, %s156
      %p170 = scmp.eq.s32.totalorder %s24, 3
      %p171 = por %p169, %p170
      %p173 = scmp.ne.s32.totalorder %s156, %s172
      %p174 = scmp.eq.s32.totalorder %s24, 0
      %p175 = por %p173, %p174
      %p176 = scmp.le.s32.totalorder 1, %s18
      %p177 = scmp.lt.s32.totalorder %s18, 5
      %p178 = pnand %p176, %p177
      %p179 = pneg %p178
      // Predicated region
      $region9: #{tpu_custom_call.1} parent=5 // pred_check
        _
      $region10: #{tpu_custom_call.1} parent=5 // pred_check_branch
        %181 = sbr.rel (%p178) target = $region12
      $region11: #{tpu_custom_call.1} parent=5 // pred_region
        %s182 = ssub.s32 %s18, 1
      $region12: #{tpu_custom_call.1} parent=5 // pred_fallthru
        _
      %p183 = scmp.lt.s32.totalorder %s18, 4
      // Predicated region
      $region13: #{tpu_custom_call.1} parent=5 // pred_check
        %p184 = pneg %p183
      $region14: #{tpu_custom_call.1} parent=5 // pred_check_branch
        %186 = sbr.rel (%p184) target = $region16
      $region15: #{tpu_custom_call.1} parent=5 // pred_region
        // Predicated region
        $region17: #{tpu_custom_call.1} parent=15 // pred_check
          %p187 = pneg %p54
        $region18: #{tpu_custom_call.1} parent=15 // pred_check_branch
          %189 = sbr.rel (%p187) target = $region20
        $region19: #{tpu_custom_call.1} parent=15 // pred_region
          %s190 = sand.u32 %s44, 1
          %s191 = scalar_lea.sflag [#allocation3], %s190
          %s192 = sand.u32 %s44, 1
          %s193 = smul.addr %s192, 16
          %s194 = scalar_lea.vmem [#allocation2], %s193
          %s195 = smul.u32 %s25, 4
          %s196 = sadd.s32 %s195, %s26
          %s197 = smul.u32 2, %s196
          %s199 = ssub.s32 256, 256
          %200 = vsyncadd %s191, %s199
          %s201 = smul.addr %s197, 128
          %s202 = scalar_lea.hbm %s0, %s201
          %s204 = sshll.u32 %s194, 4
          %s205 = int_to_ptr.vmem [resolvable:$true] %s204
          %207 = dma.hbm_to_vmem [thread:$0]  %s202, 256, %s205, %s191
        $region20: #{tpu_custom_call.1} parent=15 // pred_fallthru
          _
        // Predicated region
        $region21: #{tpu_custom_call.1} parent=15 // pred_check
          %p208 = pneg %p84
        $region22: #{tpu_custom_call.1} parent=15 // pred_check_branch
          %210 = sbr.rel (%p208) target = $region24
        $region23: #{tpu_custom_call.1} parent=15 // pred_region
          %s211 = sand.u32 %s74, 1
          %s212 = scalar_lea.sflag [#allocation6], %s211
          %s213 = sand.u32 %s74, 1
          %s214 = smul.addr %s213, 16
          %s215 = scalar_lea.vmem [#allocation5], %s214
          %s216 = smul.u32 %s25, 4
          %s217 = sadd.s32 %s216, %s26
          %s218 = smul.u32 2, %s217
          %s220 = ssub.s32 256, 256
          %221 = vsyncadd %s212, %s220
          %s222 = smul.addr %s218, 128
          %s223 = scalar_lea.hbm %s1, %s222
          %s225 = sshll.u32 %s215, 4
          %s226 = int_to_ptr.vmem [resolvable:$true] %s225
          %228 = dma.hbm_to_vmem [thread:$0]  %s223, 256, %s226, %s212
        $region24: #{tpu_custom_call.1} parent=15 // pred_fallthru
          _
      $region16: #{tpu_custom_call.1} parent=5 // pred_fallthru
        _
      %p229 = scmp.le.s32.totalorder 1, %s18
      %p230 = scmp.lt.s32.totalorder %s18, 5
      %p231 = pnand %p229, %p230
      %p232 = pneg %p231
      // Predicated region
      $region25: #{tpu_custom_call.1} parent=5 // pred_check
        _
      $region26: #{tpu_custom_call.1} parent=5 // pred_check_branch
        %234 = sbr.rel (%p231) target = $region28
      $region27: #{tpu_custom_call.1} parent=5 // pred_region
        %s235 = ssub.s32 %s18, 1
        %s236 = sand.u32 %s47, 1
        %s237 = scalar_lea.sflag [#allocation3], %s236
        %s238 = sand.u32 %s47, 1
        %s239 = smul.addr %s238, 16
        %s240 = scalar_lea.vmem [#allocation2], %s239
        // Predicated region
        $region29: #{tpu_custom_call.1} parent=27 // pred_check
          %p241 = pneg %p60
        $region30: #{tpu_custom_call.1} parent=27 // pred_check_branch
          %243 = sbr.rel (%p241) target = $region32
        $region31: #{tpu_custom_call.1} parent=27 // pred_region
          %244 = dma.done %s237, 256
        $region32: #{tpu_custom_call.1} parent=27 // pred_fallthru
          _
        %s245 = sand.u32 %s77, 1
        %s246 = scalar_lea.sflag [#allocation6], %s245
        %s247 = sand.u32 %s77, 1
        %s248 = smul.addr %s247, 16
        %s249 = scalar_lea.vmem [#allocation5], %s248
        // Predicated region
        $region33: #{tpu_custom_call.1} parent=27 // pred_check
          %p250 = pneg %p90
        $region34: #{tpu_custom_call.1} parent=27 // pred_check_branch
          %252 = sbr.rel (%p250) target = $region36
        $region35: #{tpu_custom_call.1} parent=27 // pred_region
          %253 = dma.done %s246, 256
        $region36: #{tpu_custom_call.1} parent=27 // pred_fallthru
          _
        %s254 = sand.u32 %s47, 1
        %s255 = scalar_lea.sflag [#allocation3], %s254
        %s256 = sand.u32 %s47, 1
        %s257 = smul.addr %s256, 16
        %s258 = scalar_lea.vmem [#allocation2], %s257
        %p259 = pneg %p60
        %p260 = pneg %p57
        %s261 = sand.u32 %s77, 1
        %s262 = scalar_lea.sflag [#allocation6], %s261
        %s263 = sand.u32 %s77, 1
        %s264 = smul.addr %s263, 16
        %s265 = scalar_lea.vmem [#allocation5], %s264
        %p266 = pneg %p90
        %p267 = pneg %p87
        %p268 = pneg %p116
        %p269 = pneg %p113
        %p270 = pneg %p142
        %p271 = pneg %p139
        %p272 = scmp.lt.s32.totalorder %s27, 0
        %s273 = scalar_select %p272, %s27, 0
        %s274 = smul.addr %s273, 8
        %s275 = scalar_lea.vmem %s3, %s274
        %p276 = pneg %p168
        %p277 = pneg %p165
        %p278 = scmp.lt.s32.totalorder %s27, 0
        %s279 = scalar_select %p278, %s27, 0
        %s280 = smul.addr %s279, 8
        %s281 = scalar_lea.vmem %s4, %s280
        %s282 = smul.u32 %s27, 4
        %s283 = sadd.s32 %s282, %s28
        %s284 = smul.u32 2, %s283
        %s285 = smul.u32 %s27, 4
        %s286 = sadd.s32 %s285, %s28
        %s287 = smul.u32 2, %s286
        %p288 = scmp.lt.s32.totalorder %s27, 0
        %s289 = scalar_select %p288, %s27, 0
        %s290 = smul.addr %s289, 8
        %s291 = scalar_lea.vmem %s3, %s290
        %p292 = scmp.lt.s32.totalorder %s27, 0
        %s293 = scalar_select %p292, %s27, 0
        %s294 = smul.addr %s293, 8
        %s295 = scalar_lea.vmem %s4, %s294
        %p296 = scmp.eq.s32.totalorder %s28, 0
        // Predicated region
        $region37: #{tpu_custom_call.1} parent=27 // pred_check
          %p297 = pneg %p296
        $region38: #{tpu_custom_call.1} parent=27 // pred_check_branch
          %299 = sbr.rel (%p297) target = $region40
        $region39: #{tpu_custom_call.1} parent=27 // pred_region
          %vm300 = vcmask 64512
          %301 = vst.msk [vmem:[#allocation7] sm:$0xff] %vm300, 0.0
          %vm302 = vcmask 7168
          %303 = vst.msk [vmem:[%s291] sm:$0xff] %vm302, 0.0
          %304 = vst.msk [vmem:[%s295] sm:$0xff] %vm302, 0.0
        $region40: #{tpu_custom_call.1} parent=27 // pred_fallthru
          _
        %v305 = vld [vmem:[%s240] sm:$0xff]
        %v306 = vld [vmem:[%s240 + $0x8] sm:$0xff]
        %v307 = vld [vmem:[%s249] sm:$0xff]
        %v308 = vld [vmem:[%s249 + $0x8] sm:$0xff]
        %v309 = vld [vmem:[#allocation7] sm:$0xff]
        %310 = vmatprep.subr.mxu0 0.0
        %311 = vmatpush1.xpose.msra.mxu0 0.0
        %312 = vmatprep.subr.mxu0 0.0
        %313 = vmatpush1.xpose.msra.mxu0 0.0
        %314 = vmatprep.subr.mxu0 0.0
        %315 = vmatpush1.xpose.msra.mxu0 0.0
        %316 = vmatprep.subr.mxu0 0.0
        %317 = vmatpush1.xpose.msra.mxu0 0.0
        %318 = vmatprep.subr.mxu0 0.0
        %319 = vmatpush1.xpose.msra.mxu0 0.0
        %320 = vmatprep.subr.mxu0 0.0
        %321 = vmatpush1.xpose.msra.mxu0 0.0
        %322 = vmatprep.subr.mxu0 0.0
        %323 = vmatpush1.xpose.msra.mxu0 0.0
        %324 = vmatprep.subr.mxu0 0.0
        %325 = vmatpush1.xpose.msra.mxu0 0.0
        %326 = vmatprep.subr.mxu0 0.0
        %327 = vmatpush1.xpose.msra.mxu0 0.0
        %328 = vmatprep.subr.mxu0 0.0
        %329 = vmatpush1.xpose.msra.mxu0 0.0
        %330 = vmatprep.subr.mxu0 0.0
        %331 = vmatpush1.xpose.msra.mxu0 0.0
        %332 = vmatprep.subr.mxu0 0.0
        %333 = vmatpush1.xpose.msra.mxu0 0.0
        %334 = vmatprep.subr.mxu0 0.0
        %335 = vmatpush1.xpose.msra.mxu0 0.0
        %336 = vmatprep.subr.mxu0 0.0
        %337 = vmatpush1.xpose.msra.mxu0 0.0
        %338 = vmatprep.subr.mxu0 0.0
        %339 = vmatpush1.xpose.msra.mxu0 0.0
        %340 = vmatprep.subr.mxu0 %v308
        %341 = vmatpush1.xpose.msra.mxu0 %v307
        %342 = vmatprep.subr.mxu0 0.0
        %343 = vmatpush2.xpose.msra.mxu0 0.0
        %344 = vmatprep.subr.mxu0 0.0
        %345 = vmatpush2.xpose.msra.mxu0 0.0
        %346 = vmatprep.subr.mxu0 0.0
        %347 = vmatpush2.xpose.msra.mxu0 0.0
        %348 = vmatprep.subr.mxu0 0.0
        %349 = vmatpush2.xpose.msra.mxu0 0.0
        %350 = vmatprep.subr.mxu0 0.0
        %351 = vmatpush2.xpose.msra.mxu0 0.0
        %352 = vmatprep.subr.mxu0 0.0
        %353 = vmatpush2.xpose.msra.mxu0 0.0
        %354 = vmatprep.subr.mxu0 0.0
        %355 = vmatpush2.xpose.msra.mxu0 0.0
        %356 = vmatprep.subr.mxu0 0.0
        %357 = vmatpush2.xpose.msra.mxu0 0.0
        %358 = vmatprep.subr.mxu0 0.0
        %359 = vmatpush2.xpose.msra.mxu0 0.0
        %360 = vmatprep.subr.mxu0 0.0
        %361 = vmatpush2.xpose.msra.mxu0 0.0
        %362 = vmatprep.subr.mxu0 0.0
        %363 = vmatpush2.xpose.msra.mxu0 0.0
        %364 = vmatprep.subr.mxu0 0.0
        %365 = vmatpush2.xpose.msra.mxu0 0.0
        %366 = vmatprep.subr.mxu0 0.0
        %367 = vmatpush2.xpose.msra.mxu0 0.0
        %368 = vmatprep.subr.mxu0 0.0
        %369 = vmatpush2.xpose.msra.mxu0 0.0
        %370 = vmatprep.subr.mxu0 0.0
        %371 = vmatpush2.xpose.msra.mxu0 0.0
        %372 = vmatprep.subr.mxu0 0.0
        %373 = vmatpush2.xpose.msra.mxu0 0.0
        %374 = vmatprep.mubr.f32.mxu0 %v306
        %375 = vmatmul.mubr.f32.gmra.mxu0 %v305
        %v376 = vpop.f32.mrf.mxu0
        %v377 = vadd.f32 0.0, %v376
        %v378 = vpop.f32.mrf.mxu0
        %379 = vdwg.mxu0
        %v380 = vadd.f32 %v309, %v377
        %vm381 = vcmask 64512
        %382 = vst.msk [vmem:[#allocation7] sm:$0xff] %vm381, %v380
        %v383 = vld [vmem:[%s291] sm:$0xff]
        %v384 = vmul.f32 %v305, %v305
        %v385 = vmul.f32 %v306, %v306
        %v386 = vadd.f32 %v384, %v385
        %387 = vadd.xlane.f32.xlu0 %v386
        %v388 = vpop.xlane.xlu0 %387
        %v389 = vadd.f32 %v383, %v388
        %vm390 = vcmask 7168
        %391 = vst.msk [vmem:[%s291] sm:$0xff] %vm390, %v389
        %v392 = vld [vmem:[%s295] sm:$0xff]
        %v393 = vmul.f32 %v307, %v307
        %v394 = vmul.f32 %v308, %v308
        %v395 = vadd.f32 %v393, %v394
        %396 = vadd.xlane.f32.xlu0 %v395
        %v397 = vpop.xlane.xlu0 %396
        %v398 = vadd.f32 %v392, %v397
        %399 = vst.msk [vmem:[%s295] sm:$0xff] %vm390, %v398
        %p400 = scmp.lt.s32.totalorder %s27, 0
        %s401 = scalar_select %p400, %s27, 0
        %s402 = smul.addr %s401, 8
        %s403 = scalar_lea.vmem %s3, %s402
        %p404 = scmp.lt.s32.totalorder %s27, 0
        %s405 = scalar_select %p404, %s27, 0
        %s406 = smul.addr %s405, 8
        %s407 = scalar_lea.vmem %s4, %s406
        // Predicated region
        $region41: #{tpu_custom_call.1} parent=27 // pred_check
          %p408 = pneg %p113
        $region42: #{tpu_custom_call.1} parent=27 // pred_check_branch
          %410 = sbr.rel (%p408) target = $region44
        $region43: #{tpu_custom_call.1} parent=27 // pred_region
          %s412 = ssub.s32 128, 128
          %413 = vsyncadd [#allocation4], %s412
          %s414 = smul.addr %s27, 128
          %s415 = scalar_lea.hbm %s2, %s414
          %s417 = sshll.u32 [#allocation7], 4
          %s418 = int_to_ptr.vmem [resolvable:$true] %s417
          %420 = dma.vmem_to_hbm [thread:$0]  %s418, 128, %s415, [#allocation4]
        $region44: #{tpu_custom_call.1} parent=27 // pred_fallthru
          _
        // Predicated region
        $region45: #{tpu_custom_call.1} parent=27 // pred_check
          %p421 = pneg %p139
        $region46: #{tpu_custom_call.1} parent=27 // pred_check_branch
          %423 = sbr.rel (%p421) target = $region48
        $region47: #{tpu_custom_call.1} parent=27 // pred_region
          _
        $region48: #{tpu_custom_call.1} parent=27 // pred_fallthru
          _
        // Predicated region
        $region49: #{tpu_custom_call.1} parent=27 // pred_check
          %p424 = pneg %p165
        $region50: #{tpu_custom_call.1} parent=27 // pred_check_branch
          %426 = sbr.rel (%p424) target = $region52
        $region51: #{tpu_custom_call.1} parent=27 // pred_region
          _
        $region52: #{tpu_custom_call.1} parent=27 // pred_fallthru
          _
        // Predicated region
        $region53: #{tpu_custom_call.1} parent=27 // pred_check
          %p427 = pneg %p113
        $region54: #{tpu_custom_call.1} parent=27 // pred_check_branch
          %429 = sbr.rel (%p427) target = $region56
        $region55: #{tpu_custom_call.1} parent=27 // pred_region
          %430 = dma.done [#allocation4], 128
        $region56: #{tpu_custom_call.1} parent=27 // pred_fallthru
          _
        // Predicated region
        $region57: #{tpu_custom_call.1} parent=27 // pred_check
          %p431 = pneg %p139
        $region58: #{tpu_custom_call.1} parent=27 // pred_check_branch
          %433 = sbr.rel (%p431) target = $region60
        $region59: #{tpu_custom_call.1} parent=27 // pred_region
          %p434 = scmp.lt.s32.totalorder %s27, 0
          %s435 = scalar_select %p434, %s27, 0
          %s436 = smul.addr %s435, 8
          %s437 = scalar_lea.vmem %s3, %s436
        $region60: #{tpu_custom_call.1} parent=27 // pred_fallthru
          _
        // Predicated region
        $region61: #{tpu_custom_call.1} parent=27 // pred_check
          %p438 = pneg %p165
        $region62: #{tpu_custom_call.1} parent=27 // pred_check_branch
          %440 = sbr.rel (%p438) target = $region64
        $region63: #{tpu_custom_call.1} parent=27 // pred_region
          %p441 = scmp.lt.s32.totalorder %s27, 0
          %s442 = scalar_select %p441, %s27, 0
          %s443 = smul.addr %s442, 8
          %s444 = scalar_lea.vmem %s4, %s443
        $region64: #{tpu_custom_call.1} parent=27 // pred_fallthru
          _
      $region28: #{tpu_custom_call.1} parent=5 // pred_fallthru
        _
      %p445 = scmp.le.s32.totalorder 2, %s18
      // Predicated region
      $region65: #{tpu_custom_call.1} parent=5 // pred_check
        %p446 = pneg %p445
      $region66: #{tpu_custom_call.1} parent=5 // pred_check_branch
        %448 = sbr.rel (%p446) target = $region68
      $region67: #{tpu_custom_call.1} parent=5 // pred_region
        %s449 = ssub.s32 %s18, 2
      $region68: #{tpu_custom_call.1} parent=5 // pred_fallthru
        _
    $region6: #{tpu_custom_call.1} parent=1 // loop_footer
      %s22 = sadd.s32 1, %s18
    $region7: #{tpu_custom_call.1} parent=1 // loop_footer_branch
      %17 = sbr.rel target = $region3
    $region8: #{tpu_custom_call.1} parent=1 // loop_exit
      _
    %450 = vsyncpa [#allocation3], 1
    %s451 = scalar_lea.sflag [#allocation3], 1
    %452 = vsyncpa %s451, 1
    %453 = vsyncpa [#allocation6], 1
    %s454 = scalar_lea.sflag [#allocation6], 1
    %455 = vsyncpa %s454, 1
    %456 = vsyncpa [#allocation4], 1
    %s457 = scalar_lea.sflag [#allocation4], 1
    %458 = vsyncpa %s457, 1

</llo_original>
